<compile_context>
chip_gen: v7x
topology: tpu7x:2x2x1
jax: 0.10.0
libtpu: 0.0.40
codegen_flags: <defaults>
</compile_context>

<pallas_src>
import functools

import jax
import jax.numpy as jnp
from jax.experimental import pallas as pl
from jax.experimental.pallas import tpu as pltpu


# ----------------------------------------------------------------------------
# Kernels
# ----------------------------------------------------------------------------
def _pooled_classifier_kernel(x_ref, w_ref, b_ref, logits_ref, probs_ref, *,
                              inv_hw):
    # x_ref:  (TN, C, HW) — channels-last-free layout straight from NCHW.
    # w_ref:  (C, Kp)  f32 (transpose of torch fc.weight, lane-padded).
    # b_ref:  (1, Kp)  f32 (pad columns carry -1e30).
    x = x_ref[...].astype(jnp.float32)

    # AdaptiveAvgPool2d((1,1)) == mean over the spatial (lane) axis.
    pooled = jnp.sum(x, axis=2) * inv_hw                        # (TN, C)

    logits = jnp.dot(pooled, w_ref[...],
                     preferred_element_type=jnp.float32) + b_ref[...]
    logits_ref[...] = logits

    # Numerically stable softmax (padded cols: exp(-1e30 - m) underflows to 0).
    m = jnp.max(logits, axis=1, keepdims=True)
    e = jnp.exp(logits - m)
    denom = jnp.sum(e, axis=1, keepdims=True)
    probs_ref[...] = e * pl.reciprocal(denom, approx=False)


def _nopool_classifier_kernel(x_ref, w_ref, b_ref, logits_ref, probs_ref):
    # Grid: (batch tiles, K tiles). The weight is streamed over the K axis and
    # accumulated directly into the (resident-over-K) logits output block.
    k = pl.program_id(1)

    @pl.when(k == 0)
    def _():
        logits_ref[...] = jnp.zeros_like(logits_ref)

    logits_ref[...] += jnp.dot(x_ref[...].astype(jnp.float32), w_ref[...],
                               preferred_element_type=jnp.float32)

    @pl.when(k == pl.num_programs(1) - 1)
    def _():
        logits = logits_ref[...] + b_ref[...]
        logits_ref[...] = logits
        m = jnp.max(logits, axis=1, keepdims=True)
        e = jnp.exp(logits - m)
        denom = jnp.sum(e, axis=1, keepdims=True)
        probs_ref[...] = e * pl.reciprocal(denom, approx=False)


# ----------------------------------------------------------------------------
# Tiling helpers
# ----------------------------------------------------------------------------
def _round_up(v, m):
    return ((v + m - 1) // m) * m


def _choose_batch_tile(n, row_bytes, kp, resident_bytes, target_bytes,
                       vmem_budget):
    # Per batch-row VMEM per pipeline stage:
    #   x tile (double-buffered) + logits & probs blocks (double-buffered).
    per_row = 2 * row_bytes + 4 * (kp * 4)
    avail = max(vmem_budget - resident_bytes, 8 * per_row)
    tn = min(max(target_bytes // max(row_bytes, 1), 8), avail // per_row)
    if n >= 16:
        # Keep >= 2 grid steps so a v7x megacore can split the batch axis.
        tn = min(tn, _round_up((n + 1) // 2, 8))
    if tn >= n:
        return n                       # single block == full dim (always legal)
    return max(8, (tn // 8) * 8)       # partial tail block handled by masking


def _choose_k_tile(f):
    # tk must divide F exactly (so no padded garbage enters the accumulation)
    # and be a multiple of 128 for lane-dense loads; cap at 2048 rows so the
    # double-buffered (tk, Kp) f32 weight block stays small in VMEM.
    if f <= 2048:
        return f
    for tk in range(2048, 127, -128):
        if f % tk == 0:
            return tk
    # TODO(synk): if F has no 128-multiple divisor and is huge, pad the feature
    # axis with zeros instead of keeping the whole weight resident.
    return f


# ----------------------------------------------------------------------------
# Wrapper
# ----------------------------------------------------------------------------
def image_classifier_forward(backbone_features, weight, bias,
                             use_average_pooling=True,
                             tile_target_bytes=6 << 20,
                             vmem_budget_bytes=32 << 20):
    """backbone_features: (N, C, H, W) float (NCHW, like PyTorch).
    weight: (num_classes, n_features) float (torch fc.weight layout).
    bias:   (num_classes,) float.
    Returns (logits, probabilities, class_prediction)."""
    n = backbone_features.shape[0]
    num_classes, n_features = weight.shape
    assert bias.shape == (num_classes,)

    # ---- class axis padded to a lane-dense multiple of 128 -----------------
    kp = max(128, _round_up(num_classes, 128))
    w_t = jnp.transpose(weight).astype(jnp.float32)              # (F, K)
    w_p = jnp.zeros((n_features, kp), jnp.float32).at[:, :num_classes].set(w_t)
    b_p = jnp.full((1, kp), -1e30, jnp.float32)
    b_p = b_p.at[0, :num_classes].set(bias.astype(jnp.float32))

    # Stream activations in their native floating dtype; upcast in-kernel.
    if not jnp.issubdtype(backbone_features.dtype, jnp.floating):
        backbone_features = backbone_features.astype(jnp.float32)
    itemsize = backbone_features.dtype.itemsize

    if use_average_pooling:
        _, c, h, w = backbone_features.shape
        assert c == n_features
        hw = h * w
        x = backbone_features.reshape(n, c, hw)      # contiguous: no HBM copy
        row_bytes = c * hw * itemsize
        resident = 2 * (n_features * kp * 4) + 2 * (kp * 4)
        tn = _choose_batch_tile(n, row_bytes, kp, resident,
                                tile_target_bytes, vmem_budget_bytes)
        grid = (pl.cdiv(n, tn),)
        kernel = functools.partial(_pooled_classifier_kernel, inv_hw=1.0 / hw)
        in_specs = [
            pl.BlockSpec((tn, c, hw), lambda i: (i, 0, 0)),
            pl.BlockSpec((n_features, kp), lambda i: (0, 0)),   # VMEM-resident
            pl.BlockSpec((1, kp), lambda i: (0, 0)),            # VMEM-resident
        ]
        out_specs = (pl.BlockSpec((tn, kp), lambda i: (i, 0)),
                     pl.BlockSpec((tn, kp), lambda i: (i, 0)))
        dim_sem = ("parallel",)
        flops = n * c * hw + 2 * n * c * kp + 5 * n * kp
        bytes_accessed = (n * c * hw * itemsize + n_features * kp * 4
                          + kp * 4 + 2 * n * kp * 4)
    else:
        x = backbone_features.reshape(n, -1)         # torch.flatten(x, 1)
        f = x.shape[1]
        assert f == n_features
        tk = _choose_k_tile(f)
        k_steps = f // tk
        row_bytes = tk * itemsize
        resident = 2 * (tk * kp * 4) + 2 * (kp * 4)
        tn = _choose_batch_tile(n, row_bytes, kp, resident,
                                tile_target_bytes, vmem_budget_bytes)
        grid = (pl.cdiv(n, tn), k_steps)
        kernel = _nopool_classifier_kernel
        in_specs = [
            pl.BlockSpec((tn, tk), lambda i, k: (i, k)),
            pl.BlockSpec((tk, kp), lambda i, k: (k, 0)),   # streamed over K
            pl.BlockSpec((1, kp), lambda i, k: (0, 0)),
        ]
        out_specs = (pl.BlockSpec((tn, kp), lambda i, k: (i, 0)),
                     pl.BlockSpec((tn, kp), lambda i, k: (i, 0)))
        dim_sem = ("parallel", "arbitrary")
        flops = 2 * n * f * kp + 5 * n * kp
        bytes_accessed = (n * f * itemsize + f * kp * 4
                          + kp * 4 + 2 * n * kp * 4)

    logits_p, probs_p = pl.pallas_call(
        kernel,
        grid=grid,
        in_specs=in_specs,
        out_specs=out_specs,
        out_shape=(
            jax.ShapeDtypeStruct((n, kp), jnp.float32),
            jax.ShapeDtypeStruct((n, kp), jnp.float32),
        ),
        compiler_params=pltpu.CompilerParams(
            dimension_semantics=dim_sem,
            vmem_limit_bytes=40 << 20),
        cost_estimate=pl.CostEstimate(
            flops=int(flops),
            transcendentals=int(n * kp),
            bytes_accessed=int(bytes_accessed)),
    )(x, w_p, b_p)

    logits = logits_p[:, :num_classes]
    probs = probs_p[:, :num_classes]
    # Argmax in the wrapper over the tiny (N, K) logits (softmax is monotone,
    # identical result; avoids a (tn, 1) masked-store output in the kernel).
    # TODO(synk): torch.argmax returns int64; we keep TPU-native int32 here.
    class_prediction = jnp.argmax(logits, axis=1).astype(jnp.int32)
    return logits, probs, class_prediction


# ----------------------------------------------------------------------------
# Self-test
# ----------------------------------------------------------------------------
if __name__ == "__main__":
    N, C, H, W = 2, 4, 16, 16
    NUM_CLASSES = 10

    key = jax.random.PRNGKey(0)
    kx, kw, kb, kw2, kb2, kx3, kw3, kb3 = jax.random.split(key, 8)

    x = jax.random.normal(kx, (N, C, H, W), dtype=jnp.float32)

    # --- pooled path (default ImageClassifier config) -----------------------
    bound = 1.0 / jnp.sqrt(jnp.float32(C))
    weight = jax.random.uniform(kw, (NUM_CLASSES, C), jnp.float32, -bound, bound)
    bias = jax.random.uniform(kb, (NUM_CLASSES,), jnp.float32, -bound, bound)

    logits, probs, pred = image_classifier_forward(
        x, weight, bias, use_average_pooling=True)
    jax.block_until_ready((logits, probs, pred))

    pooled_ref = jnp.mean(x, axis=(2, 3))
    logits_ref = pooled_ref @ weight.T + bias
    probs_ref = jax.nn.softmax(logits_ref, axis=1)
    pred_ref = jnp.argmax(probs_ref, axis=1).astype(jnp.int32)

    assert logits.shape == (N, NUM_CLASSES) and probs.shape == (N, NUM_CLASSES)
    assert pred.shape == (N,)
    assert jnp.allclose(logits, logits_ref, atol=1e-4, rtol=1e-5)
    assert jnp.allclose(probs, probs_ref, atol=1e-5)
    assert jnp.array_equal(pred, pred_ref)

    # --- no-pooling path, small F (single K step) ---------------------------
    F1 = C * H * W
    bound2 = 1.0 / jnp.sqrt(jnp.float32(F1))
    weight2 = jax.random.uniform(kw2, (NUM_CLASSES, F1), jnp.float32,
                                 -bound2, bound2)
    bias2 = jax.random.uniform(kb2, (NUM_CLASSES,), jnp.float32,
                               -bound2, bound2)

    logits2, probs2, pred2 = image_classifier_forward(
        x, weight2, bias2, use_average_pooling=False)
    jax.block_until_ready((logits2, probs2, pred2))

    x_flat = x.reshape(N, -1)
    logits2_ref = x_flat @ weight2.T + bias2
    probs2_ref = jax.nn.softmax(logits2_ref, axis=1)
    pred2_ref = jnp.argmax(probs2_ref, axis=1).astype(jnp.int32)

    assert logits2.shape == (N, NUM_CLASSES)
    assert jnp.allclose(logits2, logits2_ref, atol=1e-4, rtol=1e-5)
    assert jnp.allclose(probs2, probs2_ref, atol=1e-5)
    assert jnp.array_equal(pred2, pred2_ref)

    # --- no-pooling path, wider F (exercises the K-tiled accumulator) -------
    C3 = 64
    x3 = jax.random.normal(kx3, (N, C3, H, W), dtype=jnp.float32)
    F3 = C3 * H * W                     # 16384 -> tk=2048, 8 K grid steps
    bound3 = 1.0 / jnp.sqrt(jnp.float32(F3))
    weight3 = jax.random.uniform(kw3, (NUM_CLASSES, F3), jnp.float32,
                                 -bound3, bound3)
    bias3 = jax.random.uniform(kb3, (NUM_CLASSES,), jnp.float32,
                               -bound3, bound3)

    logits3, probs3, pred3 = image_classifier_forward(
        x3, weight3, bias3, use_average_pooling=False)
    jax.block_until_ready((logits3, probs3, pred3))

    x3_flat = x3.reshape(N, -1)
    logits3_ref = x3_flat @ weight3.T + bias3
    probs3_ref = jax.nn.softmax(logits3_ref, axis=1)
    pred3_ref = jnp.argmax(probs3_ref, axis=1).astype(jnp.int32)

    assert logits3.shape == (N, NUM_CLASSES)
    assert jnp.allclose(logits3, logits3_ref, atol=1e-4, rtol=1e-5)
    assert jnp.allclose(probs3, probs3_ref, atol=1e-5)
    assert jnp.array_equal(pred3, pred3_ref)

    print("KERNEL_OK")
</pallas_src>

<mosaic_0001>
module attributes {stable_mosaic.version = 11 : i64} {
  func.func @_pooled_classifier_kernel(%arg0: i32, %arg1: memref<2x4x256xf32, #tpu.memory_space<vmem>>, %arg2: memref<4x128xf32, #tpu.memory_space<vmem>>, %arg3: memref<1x128xf32, #tpu.memory_space<vmem>>, %arg4: memref<2x128xf32, #tpu.memory_space<vmem>>, %arg5: memref<2x128xf32, #tpu.memory_space<vmem>>) attributes {dimension_semantics = [#tpu.dimension_semantics<parallel>], iteration_bounds = array<i64: 1>, scalar_prefetch = 0 : i64, scratch_operands = 0 : i64, tpu.core_type = #tpu.core_type<tc>, window_params = [{transform_indices = @transform_0, window_bounds = array<i64: 2, 4, 256>}, {pipeline_mode = #tpu.pipeline_mode<synchronous>, transform_indices = @transform_1, window_bounds = array<i64: 4, 128>}, {pipeline_mode = #tpu.pipeline_mode<synchronous>, transform_indices = @transform_2, window_bounds = array<i64: 1, 128>}, {transform_indices = @transform_3, window_bounds = array<i64: 2, 128>}, {transform_indices = @transform_4, window_bounds = array<i64: 2, 128>}]} {
    %c0 = arith.constant 0 : index
    %c0_0 = arith.constant 0 : index
    %c0_1 = arith.constant 0 : index
    %0 = vector.load %arg1[%c0, %c0_0, %c0_1] : memref<2x4x256xf32, #tpu.memory_space<vmem>>, vector<2x4x256xf32>
    %cst = arith.constant dense<0.000000e+00> : vector<2x4xf32>
    %1 = vector.multi_reduction <add>, %0, %cst [2] : vector<2x4x256xf32> to vector<2x4xf32>
    %cst_2 = arith.constant 3.906250e-03 : f32
    %2 = vector.broadcast %cst_2 : f32 to vector<2x4xf32>
    %3 = arith.mulf %1, %2 : vector<2x4xf32>
    %c0_3 = arith.constant 0 : index
    %c0_4 = arith.constant 0 : index
    %4 = vector.load %arg2[%c0_3, %c0_4] : memref<4x128xf32, #tpu.memory_space<vmem>>, vector<4x128xf32>
    %cst_5 = arith.constant dense<0.000000e+00> : vector<2x128xf32>
    %5 = tpu.matmul %3, %4, %cst_5 {dimension_numbers = #tpu.dot_dimension_numbers<[1], [0], [0], [1], [0, 0, 1, 1], [], []>} : vector<2x4xf32>, vector<4x128xf32>, vector<2x128xf32> -> vector<2x128xf32>
    %c0_6 = arith.constant 0 : index
    %c0_7 = arith.constant 0 : index
    %6 = vector.load %arg3[%c0_6, %c0_7] : memref<1x128xf32, #tpu.memory_space<vmem>>, vector<1x128xf32>
    %7 = vector.broadcast %6 : vector<1x128xf32> to vector<2x128xf32>
    %8 = arith.addf %5, %7 : vector<2x128xf32>
    %c0_8 = arith.constant 0 : index
    %c0_9 = arith.constant 0 : index
    %9 = vector.load %arg4[%c0_8, %c0_9] : memref<2x128xf32, #tpu.memory_space<vmem>>, vector<2x128xf32>
    tpu.vector_store %arg4[%c0_8, %c0_9], %8 {strides = array<i32>} : memref<2x128xf32, #tpu.memory_space<vmem>>, vector<2x128xf32>,
    %cst_10 = arith.constant dense<0xFF800000> : vector<2xf32>
    %10 = vector.multi_reduction <maximumf>, %8, %cst_10 [1] : vector<2x128xf32> to vector<2xf32>
    %11 = vector.shape_cast %10 : vector<2xf32> to vector<2x1xf32>
    %12 = vector.broadcast %11 : vector<2x1xf32> to vector<2x128xf32>
    %13 = arith.subf %8, %12 : vector<2x128xf32>
    %14 = math.exp %13 : vector<2x128xf32>
    %cst_11 = arith.constant dense<0.000000e+00> : vector<2xf32>
    %15 = vector.multi_reduction <add>, %14, %cst_11 [1] : vector<2x128xf32> to vector<2xf32>
    %16 = vector.shape_cast %15 : vector<2xf32> to vector<2x1xf32>
    %17 = tpu.reciprocal %16 : vector<2x1xf32> -> vector<2x1xf32>
    %18 = vector.broadcast %17 : vector<2x1xf32> to vector<2x128xf32>
    %19 = arith.mulf %14, %18 : vector<2x128xf32>
    %c0_12 = arith.constant 0 : index
    %c0_13 = arith.constant 0 : index
    %20 = vector.load %arg5[%c0_12, %c0_13] : memref<2x128xf32, #tpu.memory_space<vmem>>, vector<2x128xf32>
    tpu.vector_store %arg5[%c0_12, %c0_13], %19 {strides = array<i32>} : memref<2x128xf32, #tpu.memory_space<vmem>>, vector<2x128xf32>,
    return
  }
  func.func @transform_0(%arg0: i32) -> (i32, i32, i32) {
    %c0_i32 = arith.constant 0 : i32
    %c0_i32_0 = arith.constant 0 : i32
    %c0_i32_1 = arith.constant 0 : i32
    return %arg0, %c0_i32, %c0_i32_0 : i32, i32, i32
  }
  func.func @transform_1(%arg0: i32) -> (i32, i32) {
    %c0_i32 = arith.constant 0 : i32
    %c0_i32_0 = arith.constant 0 : i32
    %c0_i32_1 = arith.constant 0 : i32
    return %c0_i32, %c0_i32_0 : i32, i32
  }
  func.func @transform_2(%arg0: i32) -> (i32, i32) {
    %c0_i32 = arith.constant 0 : i32
    %c0_i32_0 = arith.constant 0 : i32
    %c0_i32_1 = arith.constant 0 : i32
    return %c0_i32, %c0_i32_0 : i32, i32
  }
  func.func @transform_3(%arg0: i32) -> (i32, i32) {
    %c0_i32 = arith.constant 0 : i32
    %c0_i32_0 = arith.constant 0 : i32
    return %arg0, %c0_i32 : i32, i32
  }
  func.func @transform_4(%arg0: i32) -> (i32, i32) {
    %c0_i32 = arith.constant 0 : i32
    %c0_i32_0 = arith.constant 0 : i32
    return %arg0, %c0_i32 : i32, i32
  }
}

</mosaic_0001>

<llo_original>
// kernel: tpu_custom_call.1
$region0: #{tpu_custom_call.1}
  #allocation0 [shape = 'u32[]', space=smem, size = 0x4, offset = 0x4, fixed_abs, tag = 'smem constant byte address 0x4 - core index']
  #allocation1 [shape = 'u32[144,128]{1,0:T(1,128)}', space=vmem, size = 0x12000, scoped, tag = 'internal scratch']
  %s0 = inlined_call_operand.hbm [shape: f32[2,4,256], index: 0, kind: input, shape index: {}]
  %s1 = inlined_call_operand.hbm [shape: f32[4,128], index: 1, kind: input, shape index: {}]
  %s2 = inlined_call_operand.vmem [shape: f32[1,128], index: 2, kind: input, shape index: {}]
  %s3 = inlined_call_operand.hbm [shape: f32[2,128], index: 3, kind: output, shape index: {0}]
  %s4 = inlined_call_operand.hbm [shape: f32[2,128], index: 4, kind: output, shape index: {1}]
  %5 = xla_tuple %s3, %s4
  %s6 = sld [smem:[#allocation0]]
  $region38: #{tpu_custom_call.1} parent=0
    _
  %s8 = ssub.s32 1, %s6
  %s9 = scalar_select 0, %s8, %s6
  $region1: #{tpu_custom_call.1} parent=0
    #allocation2 [shape = 'u8[8192]{0}', space=vmem, size = 0x2000, scoped, tag = 'input window, operand 0, single buffered']
    #allocation3 [shape = 's32[1]{0}', space=sflag, size = 0x4, scoped, tag = 'scoped memory for tpu_custom_call.1']
    #allocation4 [shape = 's32[1]{0}', space=sflag, size = 0x4, scoped, tag = 'scoped memory for tpu_custom_call.1']
    #allocation5 [shape = 'u8[2048]{0}', space=vmem, size = 0x800, scoped, tag = 'input window, operand 1, single buffered']
    #allocation6 [shape = 's32[1]{0}', space=sflag, size = 0x4, scoped, tag = 'scoped memory for tpu_custom_call.1']
    #allocation7 [shape = 'u8[1024]{0}', space=vmem, size = 0x400, scoped, tag = 'output window, operand 0, single buffered']
    #allocation8 [shape = 'u8[1024]{0}', space=vmem, size = 0x400, scoped, tag = 'output window, operand 1, single buffered']
    #allocation9 [shape = 's32[1]{0}', space=sflag, size = 0x4, scoped, tag = 'scoped memory for tpu_custom_call.1']
    %10 = vsyncpa [#allocation3], 0
    %11 = vsyncpa [#allocation6], 0
    %12 = vsyncpa [#allocation4], 0
    %13 = vsyncpa [#allocation9], 0
    // Predicated region
    $region2: #{tpu_custom_call.1} parent=1 // pred_check
      _
    $region3: #{tpu_custom_call.1} parent=1 // pred_check_branch
      %15 = sbr.rel (0) target = $region5
    $region4: #{tpu_custom_call.1} parent=1 // pred_region
      %s17 = ssub.s32 256, 256
      %18 = vsyncadd [#allocation3], %s17
      %s19 = sshll.u32 [#allocation2], 4
      %s20 = int_to_ptr.vmem [resolvable:$true] %s19
      %25 = dma.hbm_to_vmem [thread:$0]  %s0, 256, %s20, [#allocation3], 128, 128, 8
    $region5: #{tpu_custom_call.1} parent=1 // pred_fallthru
      _
    // Predicated region
    $region6: #{tpu_custom_call.1} parent=1 // pred_check
      _
    $region7: #{tpu_custom_call.1} parent=1 // pred_check_branch
      %27 = sbr.rel (0) target = $region9
    $region8: #{tpu_custom_call.1} parent=1 // pred_region
      %s29 = ssub.s32 64, 64
      %30 = vsyncadd [#allocation6], %s29
      %s32 = sshll.u32 [#allocation5], 4
      %s33 = int_to_ptr.vmem [resolvable:$true] %s32
      %35 = dma.hbm_to_vmem [thread:$0]  %s1, 64, %s33, [#allocation6]
    $region9: #{tpu_custom_call.1} parent=1 // pred_fallthru
      _
    // Predicated region
    $region10: #{tpu_custom_call.1} parent=1 // pred_check
      _
    $region11: #{tpu_custom_call.1} parent=1 // pred_check_branch
      %37 = sbr.rel (0) target = $region13
    $region12: #{tpu_custom_call.1} parent=1 // pred_region
      _
    $region13: #{tpu_custom_call.1} parent=1 // pred_fallthru
      _
    // Predicated region
    $region14: #{tpu_custom_call.1} parent=1 // pred_check
      _
    $region15: #{tpu_custom_call.1} parent=1 // pred_check_branch
      %39 = sbr.rel (0) target = $region17
    $region16: #{tpu_custom_call.1} parent=1 // pred_region
      %40 = dma.done [#allocation3], 256
    $region17: #{tpu_custom_call.1} parent=1 // pred_fallthru
      _
    // Predicated region
    $region18: #{tpu_custom_call.1} parent=1 // pred_check
      _
    $region19: #{tpu_custom_call.1} parent=1 // pred_check_branch
      %42 = sbr.rel (0) target = $region21
    $region20: #{tpu_custom_call.1} parent=1 // pred_region
      %43 = dma.done [#allocation6], 64
    $region21: #{tpu_custom_call.1} parent=1 // pred_fallthru
      _
    %v44 = vld [vmem:[#allocation2] sm:$0xff]
    %v45 = vld [vmem:[#allocation2 + $0x8] sm:$0xff]
    %v48 = vcombine.high %v44, %v44
    %v49 = vcombine.high %v45, %v45
    %vm52 = vcmask 1043456
    %v53 = vsel %vm52, %v44, 0.0
    %v54 = vsel %vm52, %v48, 0.0
    %v55 = vadd.f32 %v53, %v54
    %56 = vadd.xlane.f32.xlu0 %v55
    %v57 = vpop.xlane.xlu0 %56
    %v58 = vsel %vm52, %v45, 0.0
    %v59 = vsel %vm52, %v49, 0.0
    %v60 = vadd.f32 %v58, %v59
    %61 = vadd.xlane.f32.xlu0 %v60
    %v62 = vpop.xlane.xlu0 %61
    %v63 = vmul.f32 %v57, 0.00390625
    %v64 = vmul.f32 %v62, 0.00390625
    %v65 = vld [vmem:[#allocation5] sm:$0xf]
    %v66 = vld [vmem:[%s2] sm:$0x1]
    %v68 = vlaneseq
    %v69 = vshrl.u32 %v68, 7
    %v70 = vsub.s32 0, %v69
    %v71 = vrot.slane %v66, %v70
    %v75 = vlaneseq
    %v76 = vand.u32 %v75, 127
    %v77 = vlaneseq
    %v78 = vshrl.u32 %v77, 7
    %v79 = vsub.s32 %v76, %v78
    %v80 = vrot.slane %v63, %v79
    %v81 = vlaneseq
    %v82 = vshrl.u32 %v81, 7
    %v83 = vsub.s32 %v76, %v82
    %v84 = vrot.slane %v64, %v83
    %vm85 = vcmask 1041409
    %v86 = vsel %vm85, %v84, %v80
    %vm87 = vcmask 31744
    %v88 = vsel %vm87, %v86, 0
    %v91 = vsel %vm52, %v65, 0
    %93 = vmatprep.subr.mxu0 0.0
    %94 = vmatpush1.msra.mxu0 %v91
    %95 = vmatprep.subr.mxu0 0.0
    %96 = vmatpush1.msra.mxu0 0.0
    %97 = vmatprep.subr.mxu0 0.0
    %98 = vmatpush1.msra.mxu0 0.0
    %99 = vmatprep.subr.mxu0 0.0
    %100 = vmatpush1.msra.mxu0 0.0
    %101 = vmatprep.subr.mxu0 0.0
    %102 = vmatpush1.msra.mxu0 0.0
    %103 = vmatprep.subr.mxu0 0.0
    %104 = vmatpush1.msra.mxu0 0.0
    %105 = vmatprep.subr.mxu0 0.0
    %106 = vmatpush1.msra.mxu0 0.0
    %107 = vmatprep.subr.mxu0 0.0
    %108 = vmatpush1.msra.mxu0 0.0
    %109 = vmatprep.subr.mxu0 0.0
    %110 = vmatpush1.msra.mxu0 0.0
    %111 = vmatprep.subr.mxu0 0.0
    %112 = vmatpush1.msra.mxu0 0.0
    %113 = vmatprep.subr.mxu0 0.0
    %114 = vmatpush1.msra.mxu0 0.0
    %115 = vmatprep.subr.mxu0 0.0
    %116 = vmatpush1.msra.mxu0 0.0
    %117 = vmatprep.subr.mxu0 0.0
    %118 = vmatpush1.msra.mxu0 0.0
    %119 = vmatprep.subr.mxu0 0.0
    %120 = vmatpush1.msra.mxu0 0.0
    %121 = vmatprep.subr.mxu0 0.0
    %122 = vmatpush1.msra.mxu0 0.0
    %123 = vmatprep.subr.mxu0 0.0
    %124 = vmatpush1.msra.mxu0 0.0
    %125 = vmatprep.subr.mxu0 0.0
    %126 = vmatpush1.msra.mxu0 0.0
    %127 = vmatprep.subr.mxu0 0.0
    %128 = vmatpush1.msra.mxu0 0.0
    %129 = vmatprep.subr.mxu0 0.0
    %130 = vmatpush1.msra.mxu0 0.0
    %131 = vmatprep.subr.mxu0 0.0
    %132 = vmatpush1.msra.mxu0 0.0
    %133 = vmatprep.subr.mxu0 0.0
    %134 = vmatpush1.msra.mxu0 0.0
    %135 = vmatprep.subr.mxu0 0.0
    %136 = vmatpush1.msra.mxu0 0.0
    %137 = vmatprep.subr.mxu0 0.0
    %138 = vmatpush1.msra.mxu0 0.0
    %139 = vmatprep.subr.mxu0 0.0
    %140 = vmatpush1.msra.mxu0 0.0
    %141 = vmatprep.subr.mxu0 0.0
    %142 = vmatpush1.msra.mxu0 0.0
    %143 = vmatprep.subr.mxu0 0.0
    %144 = vmatpush1.msra.mxu0 0.0
    %145 = vmatprep.subr.mxu0 0.0
    %146 = vmatpush1.msra.mxu0 0.0
    %147 = vmatprep.subr.mxu0 0.0
    %148 = vmatpush1.msra.mxu0 0.0
    %149 = vmatprep.subr.mxu0 0.0
    %150 = vmatpush1.msra.mxu0 0.0
    %151 = vmatprep.subr.mxu0 0.0
    %152 = vmatpush1.msra.mxu0 0.0
    %153 = vmatprep.subr.mxu0 0.0
    %154 = vmatpush1.msra.mxu0 0.0
    %155 = vmatprep.subr.mxu0 0.0
    %156 = vmatpush1.msra.mxu0 0.0
    %157 = vmatprep.mubr.f32.mxu0 0.0
    %158 = vmatmul.mubr.f32.gmra.mrb[0].mxu0 %v88
    %v159 = vpop.f32.mrb[0].mxu0
    %v160 = vadd.f32 %v71, %v159
    %v161 = vpop.f32.mrb[0].mxu0
    %162 = vdwg.mxu0
    %163 = vst [vmem:[#allocation7] sm:$0x3] %v160
    %vm164 = vcmask 1041408
    %v165 = vsel %vm164, %v160, -inf
    %166 = vmax.xlane.f32.xlu0 %v165
    %v167 = vpop.xlane.xlu0 %166
    %v168 = vsub.f32 %v160, %v167
    %v169 = vmul.f32 %v168, 1.442695
    %v170 = vpow.pop %v169
    %v171 = vsel %vm164, %v170, 0.0
    %172 = vadd.xlane.f32.xlu0 %v171
    %v173 = vpop.xlane.xlu0 %172
    %v174 = vrcp.pop %v173
    %v175 = vmul.f32 %v170, %v174
    %176 = vst [vmem:[#allocation8] sm:$0x3] %v175
    // Predicated region
    $region22: #{tpu_custom_call.1} parent=1 // pred_check
      _
    $region23: #{tpu_custom_call.1} parent=1 // pred_check_branch
      %178 = sbr.rel (0) target = $region25
    $region24: #{tpu_custom_call.1} parent=1 // pred_region
      %s180 = ssub.s32 32, 32
      %181 = vsyncadd [#allocation4], %s180
      %s183 = sshll.u32 [#allocation7], 4
      %s184 = int_to_ptr.vmem [resolvable:$true] %s183
      %186 = dma.vmem_to_hbm [thread:$0]  %s184, 32, %s3, [#allocation4]
    $region25: #{tpu_custom_call.1} parent=1 // pred_fallthru
      _
    // Predicated region
    $region26: #{tpu_custom_call.1} parent=1 // pred_check
      _
    $region27: #{tpu_custom_call.1} parent=1 // pred_check_branch
      %188 = sbr.rel (0) target = $region29
    $region28: #{tpu_custom_call.1} parent=1 // pred_region
      %s190 = ssub.s32 32, 32
      %191 = vsyncadd [#allocation9], %s190
      %s193 = sshll.u32 [#allocation8], 4
      %s194 = int_to_ptr.vmem [resolvable:$true] %s193
      %196 = dma.vmem_to_hbm [thread:$0]  %s194, 32, %s4, [#allocation9]
    $region29: #{tpu_custom_call.1} parent=1 // pred_fallthru
      _
    // Predicated region
    $region30: #{tpu_custom_call.1} parent=1 // pred_check
      _
    $region31: #{tpu_custom_call.1} parent=1 // pred_check_branch
      %198 = sbr.rel (0) target = $region33
    $region32: #{tpu_custom_call.1} parent=1 // pred_region
      %199 = dma.done [#allocation4], 32
    $region33: #{tpu_custom_call.1} parent=1 // pred_fallthru
      _
    // Predicated region
    $region34: #{tpu_custom_call.1} parent=1 // pred_check
      _
    $region35: #{tpu_custom_call.1} parent=1 // pred_check_branch
      %201 = sbr.rel (0) target = $region37
    $region36: #{tpu_custom_call.1} parent=1 // pred_region
      %202 = dma.done [#allocation9], 32
    $region37: #{tpu_custom_call.1} parent=1 // pred_fallthru
      _
    %203 = vsyncpa [#allocation3], 1
    %204 = vsyncpa [#allocation6], 1
    %205 = vsyncpa [#allocation4], 1
    %206 = vsyncpa [#allocation9], 1

</llo_original>
